<compile_context>
chip_gen: v7x
topology: tpu7x:2x2x1
jax: 0.10.0
libtpu: 0.0.40
codegen_flags: <defaults>
</compile_context>

<pallas_src>
import math

import jax
import jax.numpy as jnp
from jax import lax
from jax.experimental import pallas as pl
from jax.experimental.pallas import tpu as pltpu


def _round_up(x: int, m: int) -> int:
    return (x + m - 1) // m * m


# ---------------------------------------------------------------------------
# Pallas kernel: one (N-tile, K-tile) step of the nearest-codebook argmin.
#   grid = (num_n_tiles, num_k_tiles); N axis "parallel", K axis "arbitrary".
# ---------------------------------------------------------------------------
def _vq_argmin_kernel(x_ref, w_ref, w2_ref, idx_ref, m_sc):
    # x  : (T_N, D) original-dtype input tile (pre-pass done here, in-kernel)
    # w  : (T_K, D) codebook tile, already in the compute dtype (bf16 / f32)
    # w2 : (T_K, 1) f32 |w_k|^2 (hoisted), 1e30 sentinel on padded rows
    # idx: (1, T_N) int32 output block, resident across the K axis
    # m_sc: (1, T_N) f32 running-min scratch
    k = pl.program_id(1)
    t_k = w_ref.shape[0]

    # Fold the -2 of |x|^2 + |w|^2 - 2<x,w> into x and cast for the MXU.
    # (|x|^2 is constant per row/lane and argmin-invariant, so it is dropped.)
    xs = (x_ref[...] * -2.0).astype(w_ref.dtype)                    # (T_N, D)

    # Transposed partial distances for this codebook tile (MXU, f32 acc):
    #   dT[k, n] = |w_k|^2 - 2 <x_n, w_k>
    dT = w2_ref[...] + lax.dot_general(
        w_ref[...], xs, (((1,), (1,)), ((), ())),
        preferred_element_type=jnp.float32)                         # (T_K, T_N)

    # Within-tile min + first-occurrence argmin, int32 end-to-end.
    local_min = jnp.min(dT, axis=0, keepdims=True)                  # (1, T_N) f32
    k_iota = lax.broadcasted_iota(jnp.int32, dT.shape, 0)           # (T_K, T_N)
    local_idx = jnp.min(jnp.where(dT == local_min, k_iota, t_k),
                        axis=0, keepdims=True) + k * t_k            # (1, T_N) i32

    # Online merge with the running (min, argmin) carried across K tiles.
    @pl.when(k == 0)
    def _():
        m_sc[...] = local_min
        idx_ref[...] = local_idx

    @pl.when(k > 0)
    def _():
        better = local_min < m_sc[...]        # strict <: earlier K tile wins ties
        idx_ref[...] = jnp.where(better, local_idx, idx_ref[...])
        m_sc[...] = jnp.minimum(local_min, m_sc[...])


def vq_quantize(flat_input, codebook, *, tile_n: int = 512, tile_k: int = 1024,
                resident_k_max: int = 2048, use_bf16: bool = True):
    """Nearest-neighbour VQ.

    Returns (quantized (N, D) in the codebook dtype, indices (N,) int32).
    The Pallas kernel computes only the indices; the row gather is done in
    the wrapper (XLA gather), which removes the one-hot matmul entirely.
    """
    N, D = flat_input.shape
    K, D2 = codebook.shape
    assert D == D2
    cdt = jnp.bfloat16 if use_bf16 else jnp.float32

    # ---- N tiling: no padding / copying of x; Pallas masks the partial tile.
    if N <= 128:
        t_n = N
        num_n = 1
    else:
        half = _round_up((N + 1) // 2, 128)       # aim for >=2 tiles (v7x megacore)
        t_n = max(128, _round_up(min(tile_n, half), 128))
        t_n = min(t_n, _round_up(N, 128))
        num_n = pl.cdiv(N, t_n)

    # ---- K tiling: fully resident codebook when small, streamed otherwise.
    if K <= resident_k_max:
        t_k, num_k = K, 1
        w_dev = codebook.astype(cdt)
        w2 = jnp.sum(codebook.astype(jnp.float32) ** 2, axis=1, keepdims=True)
    else:
        t_k = max(128, _round_up(min(tile_k, K), 128))
        k_pad = _round_up(K, t_k)
        num_k = k_pad // t_k
        w_f32 = jnp.zeros((k_pad, D), jnp.float32).at[:K].set(
            codebook.astype(jnp.float32))
        w_dev = w_f32.astype(cdt)
        w2 = jnp.sum(w_f32 * w_f32, axis=1, keepdims=True)
        # Padded rows can never win the argmin; 1e30 stays finite because the
        # distance accumulates in f32 (preferred_element_type=float32).
        w2 = jnp.where(jnp.arange(k_pad)[:, None] < K, w2, jnp.float32(1e30))

    # ---- VMEM limit: derived from the chip (v5e/v6e 128 MiB -> 96; v7x 64 -> 48).
    try:
        vmem_cap = int(pltpu.get_tpu_info().vmem_capacity_bytes)
    except Exception:
        vmem_cap = 64 * 1024 * 1024
    vmem_limit = min(96 * 1024 * 1024,
                     max(32 * 1024 * 1024, vmem_cap - 16 * 1024 * 1024))

    idx2d = pl.pallas_call(
        _vq_argmin_kernel,
        out_shape=jax.ShapeDtypeStruct((1, N), jnp.int32),   # lane-dense indices
        grid=(num_n, num_k),
        in_specs=[
            pl.BlockSpec((t_n, D), lambda n, k: (n, 0)),     # x tile (pipelined)
            pl.BlockSpec((t_k, D), lambda n, k: (k, 0)),     # codebook tile
            pl.BlockSpec((t_k, 1), lambda n, k: (k, 0)),     # |w|^2 tile
        ],
        out_specs=pl.BlockSpec((1, t_n), lambda n, k: (0, n)),
        scratch_shapes=[pltpu.VMEM((1, t_n), jnp.float32)],   # running min
        compiler_params=pltpu.CompilerParams(
            dimension_semantics=("parallel", "arbitrary"),
            vmem_limit_bytes=vmem_limit,
        ),
    )(flat_input, w_dev, w2)

    idx = idx2d[0]
    # Row gather in XLA (exact codebook rows, caller's codebook dtype). This
    # replaces the in-kernel one-hot matmul, which doubled MXU FLOPs.
    q = jnp.take(codebook, idx, axis=0)
    return q, idx


# ---------------------------------------------------------------------------
# Parameter init (mirrors VectorQuantizer.__init__, deterministic).
# ---------------------------------------------------------------------------
def init_vq_params(key, num_embeddings, embedding_dim):
    k1, k2, k3 = jax.random.split(key, 3)
    bound = 1.0 / math.sqrt(embedding_dim)
    # pre_lin is defined in __init__ but never used in forward(); kept for parity.
    pre_lin_w = jax.random.uniform(
        k1, (embedding_dim, embedding_dim), jnp.float32, -bound, bound)
    pre_lin_b = jax.random.uniform(k2, (embedding_dim,), jnp.float32, -bound, bound)
    emb_w = jax.random.uniform(
        k3, (num_embeddings, embedding_dim), jnp.float32,
        -1.0 / num_embeddings, 1.0 / num_embeddings)
    return {"pre_lin_w": pre_lin_w, "pre_lin_b": pre_lin_b, "embedding": emb_w}


def vector_quantizer_forward(inputs, params, commitment_cost=0.25):
    """Exact semantics of the reference forward(): early return (0, inputs, 0, 0).

    Live path is a pure passthrough, so no copy kernel is issued at all.
    """
    del params, commitment_cost  # unused on the live path (early return)
    zero = jnp.asarray(0, dtype=jnp.int32)  # torch.tensor(0) -> scalar 0
    return zero, inputs, zero, zero
    # TODO(synk): the VQ loss / perplexity / straight-through estimator below the
    # second `return` in the PyTorch module are dead code and are not implemented.


if __name__ == "__main__":
    key = jax.random.PRNGKey(0)
    k_in, k_par, k_x2, k_w2 = jax.random.split(key, 4)

    num_embeddings = 16
    embedding_dim = 32
    commitment_cost = 0.25

    # inputs: (2, tokens, embedding_dim) — forward hstacks inputs[0]/inputs[1]
    # in its (dead) VQ path, so the leading dim must be 2.
    inputs = jax.random.normal(k_in, (2, 8, embedding_dim), dtype=jnp.float32)
    params = init_vq_params(k_par, num_embeddings, embedding_dim)

    # ---- live forward path (exact semantics: early return, passthrough) ----
    loss, quantized, perplexity, encodings = vector_quantizer_forward(
        inputs, params, commitment_cost)
    quantized = jax.block_until_ready(quantized)
    assert quantized.shape == inputs.shape
    assert bool(jnp.all(quantized == inputs))
    assert int(loss) == 0 and int(perplexity) == 0 and int(encodings) == 0

    # ---- dead-code VQ path, exact f32 parity vs torch-style reference ----
    flat_input = jnp.concatenate([inputs[0], inputs[1]], axis=1).reshape(
        -1, embedding_dim)                                   # (16, 32)
    emb = params["embedding"]
    q32, idx32 = jax.block_until_ready(
        vq_quantize(flat_input, emb, use_bf16=False))
    d_ref = (jnp.sum(flat_input ** 2, axis=1, keepdims=True)
             + jnp.sum(emb ** 2, axis=1)[None, :]
             - 2.0 * flat_input @ emb.T)
    idx_ref = jnp.argmin(d_ref, axis=1)
    assert idx32.shape == (flat_input.shape[0],)
    assert bool(jnp.all(idx32 == idx_ref))
    assert bool(jnp.all(q32 == emb[idx_ref]))

    # ---- larger, perf-shaped case: multi-tile N, bf16 MXU path, wrapper gather ----
    N, K, D = 1000, 200, 96
    x_big = jax.random.normal(k_x2, (N, D), dtype=jnp.float32)
    w_big = jax.random.uniform(k_w2, (K, D), jnp.float32, -0.05, 0.05)
    q_bf, idx_bf = jax.block_until_ready(
        vq_quantize(x_big, w_big, tile_n=512, use_bf16=True))
    assert q_bf.shape == (N, D) and idx_bf.shape == (N,)
    assert bool(jnp.all(idx_bf >= 0)) and bool(jnp.all(idx_bf < K))
    # (a) q is now an exact gather of the original f32 codebook rows
    assert bool(jnp.all(q_bf == w_big[idx_bf]))
    # (b) chosen code is the nearest neighbour up to bf16 rounding of the matmul
    d_big = (jnp.sum(x_big ** 2, axis=1, keepdims=True)
             + jnp.sum(w_big ** 2, axis=1)[None, :]
             - 2.0 * x_big @ w_big.T)
    chosen = jnp.take_along_axis(d_big, idx_bf[:, None], axis=1)[:, 0]
    assert bool(jnp.all(chosen <= d_big.min(axis=1) + 1e-1))

    # ---- streamed-K path: force 2 codebook tiles + padded rows with sentinel ----
    q_st, idx_st = jax.block_until_ready(
        vq_quantize(x_big, w_big, tile_n=512, tile_k=128,
                    resident_k_max=64, use_bf16=True))
    assert bool(jnp.all(idx_st == idx_bf))
    assert bool(jnp.all(q_st == q_bf))

    print("KERNEL_OK")
</pallas_src>

<mosaic_0001>
module attributes {stable_mosaic.version = 11 : i64} {
  func.func @_vq_argmin_kernel(%arg0: i32, %arg1: i32, %arg2: memref<16x32xf32, #tpu.memory_space<vmem>>, %arg3: memref<16x32xf32, #tpu.memory_space<vmem>>, %arg4: memref<16x1xf32, #tpu.memory_space<vmem>>, %arg5: memref<1x16xi32, #tpu.memory_space<vmem>>, %arg6: memref<1x16xf32, #tpu.memory_space<vmem>>) attributes {dimension_semantics = [#tpu.dimension_semantics<parallel>, #tpu.dimension_semantics<arbitrary>], iteration_bounds = array<i64: 1, 1>, scalar_prefetch = 0 : i64, scratch_operands = 1 : i64, tpu.core_type = #tpu.core_type<tc>, window_params = [{transform_indices = @transform_0, window_bounds = array<i64: 16, 32>}, {transform_indices = @transform_1, window_bounds = array<i64: 16, 32>}, {transform_indices = @transform_2, window_bounds = array<i64: 16, 1>}, {transform_indices = @transform_3, window_bounds = array<i64: 1, 16>}]} {
    %c0 = arith.constant 0 : index
    %c0_0 = arith.constant 0 : index
    %0 = vector.load %arg2[%c0, %c0_0] : memref<16x32xf32, #tpu.memory_space<vmem>>, vector<16x32xf32>
    %cst = arith.constant -2.000000e+00 : f32
    %1 = vector.broadcast %cst : f32 to vector<16x32xf32>
    %2 = arith.mulf %0, %1 : vector<16x32xf32>
    %c0_1 = arith.constant 0 : index
    %c0_2 = arith.constant 0 : index
    %3 = vector.load %arg4[%c0_1, %c0_2] : memref<16x1xf32, #tpu.memory_space<vmem>>, vector<16x1xf32>
    %c0_3 = arith.constant 0 : index
    %c0_4 = arith.constant 0 : index
    %4 = vector.load %arg3[%c0_3, %c0_4] : memref<16x32xf32, #tpu.memory_space<vmem>>, vector<16x32xf32>
    %cst_5 = arith.constant dense<0.000000e+00> : vector<16x16xf32>
    %5 = tpu.matmul %4, %2, %cst_5 {dimension_numbers = #tpu.dot_dimension_numbers<[1], [1], [0], [0], [0, 0, 1, 0], [], []>} : vector<16x32xf32>, vector<16x32xf32>, vector<16x16xf32> -> vector<16x16xf32>
    %6 = vector.broadcast %3 : vector<16x1xf32> to vector<16x16xf32>
    %7 = arith.addf %6, %5 : vector<16x16xf32>
    %cst_6 = arith.constant dense<0x7F800000> : vector<16xf32>
    %8 = vector.multi_reduction <minimumf>, %7, %cst_6 [0] : vector<16x16xf32> to vector<16xf32>
    %9 = vector.shape_cast %8 : vector<16xf32> to vector<1x16xf32>
    %10 = tpu.iota {dimensions = array<i32: 0>} : vector<16x16xi32>
    %11 = vector.broadcast %9 : vector<1x16xf32> to vector<16x16xf32>
    %12 = arith.cmpf oeq, %7, %11 : vector<16x16xf32>
    %c16_i32 = arith.constant 16 : i32
    %13 = vector.broadcast %c16_i32 : i32 to vector<16x16xi32>
    %14 = arith.select %12, %10, %13 : vector<16x16xi1>, vector<16x16xi32>
    %cst_7 = arith.constant dense<2147483647> : vector<16xi32>
    %15 = vector.multi_reduction <minsi>, %14, %cst_7 [0] : vector<16x16xi32> to vector<16xi32>
    %16 = vector.shape_cast %15 : vector<16xi32> to vector<1x16xi32>
    %c16_i32_8 = arith.constant 16 : i32
    %17 = arith.muli %arg1, %c16_i32_8 : i32
    %18 = vector.broadcast %17 : i32 to vector<1x16xi32>
    %19 = arith.addi %16, %18 : vector<1x16xi32>
    %c0_i32 = arith.constant 0 : i32
    %20 = arith.cmpi eq, %arg1, %c0_i32 : i32
    %21 = arith.extui %20 : i1 to i32
    %c0_i32_9 = arith.constant 0 : i32
    %22 = arith.cmpi ne, %21, %c0_i32_9 : i32
    scf.if %22 {
      %c0_12 = arith.constant 0 : index
      %c0_13 = arith.constant 0 : index
      %26 = vector.load %arg6[%c0_12, %c0_13] : memref<1x16xf32, #tpu.memory_space<vmem>>, vector<1x16xf32>
      tpu.vector_store %arg6[%c0_12, %c0_13], %9 {strides = array<i32>} : memref<1x16xf32, #tpu.memory_space<vmem>>, vector<1x16xf32>,
      %c0_14 = arith.constant 0 : index
      %c0_15 = arith.constant 0 : index
      %27 = vector.load %arg5[%c0_14, %c0_15] : memref<1x16xi32, #tpu.memory_space<vmem>>, vector<1x16xi32>
      tpu.vector_store %arg5[%c0_14, %c0_15], %19 {strides = array<i32>} : memref<1x16xi32, #tpu.memory_space<vmem>>, vector<1x16xi32>,
    } else {
    }
    %c0_i32_10 = arith.constant 0 : i32
    %23 = arith.cmpi sgt, %arg1, %c0_i32_10 : i32
    %24 = arith.extui %23 : i1 to i32
    %c0_i32_11 = arith.constant 0 : i32
    %25 = arith.cmpi ne, %24, %c0_i32_11 : i32
    scf.if %25 {
      %c0_12 = arith.constant 0 : index
      %c0_13 = arith.constant 0 : index
      %26 = vector.load %arg6[%c0_12, %c0_13] : memref<1x16xf32, #tpu.memory_space<vmem>>, vector<1x16xf32>
      %27 = arith.cmpf olt, %9, %26 : vector<1x16xf32>
      %c0_14 = arith.constant 0 : index
      %c0_15 = arith.constant 0 : index
      %28 = vector.load %arg5[%c0_14, %c0_15] : memref<1x16xi32, #tpu.memory_space<vmem>>, vector<1x16xi32>
      %29 = arith.select %27, %19, %28 : vector<1x16xi1>, vector<1x16xi32>
      %c0_16 = arith.constant 0 : index
      %c0_17 = arith.constant 0 : index
      %30 = vector.load %arg5[%c0_16, %c0_17] : memref<1x16xi32, #tpu.memory_space<vmem>>, vector<1x16xi32>
      tpu.vector_store %arg5[%c0_16, %c0_17], %29 {strides = array<i32>} : memref<1x16xi32, #tpu.memory_space<vmem>>, vector<1x16xi32>,
      %c0_18 = arith.constant 0 : index
      %c0_19 = arith.constant 0 : index
      %31 = vector.load %arg6[%c0_18, %c0_19] : memref<1x16xf32, #tpu.memory_space<vmem>>, vector<1x16xf32>
      %32 = arith.minimumf %9, %31 : vector<1x16xf32>
      %c0_20 = arith.constant 0 : index
      %c0_21 = arith.constant 0 : index
      %33 = vector.load %arg6[%c0_20, %c0_21] : memref<1x16xf32, #tpu.memory_space<vmem>>, vector<1x16xf32>
      tpu.vector_store %arg6[%c0_20, %c0_21], %32 {strides = array<i32>} : memref<1x16xf32, #tpu.memory_space<vmem>>, vector<1x16xf32>,
    } else {
    }
    return
  }
  func.func @transform_0(%arg0: i32, %arg1: i32) -> (i32, i32) {
    %c0_i32 = arith.constant 0 : i32
    %c0_i32_0 = arith.constant 0 : i32
    return %arg0, %c0_i32 : i32, i32
  }
  func.func @transform_1(%arg0: i32, %arg1: i32) -> (i32, i32) {
    %c0_i32 = arith.constant 0 : i32
    %c0_i32_0 = arith.constant 0 : i32
    return %arg1, %c0_i32 : i32, i32
  }
  func.func @transform_2(%arg0: i32, %arg1: i32) -> (i32, i32) {
    %c0_i32 = arith.constant 0 : i32
    %c0_i32_0 = arith.constant 0 : i32
    return %arg1, %c0_i32 : i32, i32
  }
  func.func @transform_3(%arg0: i32, %arg1: i32) -> (i32, i32) {
    %c0_i32 = arith.constant 0 : i32
    %c0_i32_0 = arith.constant 0 : i32
    return %c0_i32, %arg0 : i32, i32
  }
}

</mosaic_0001>

<llo_original>
// kernel: tpu_custom_call.1
$region0: #{tpu_custom_call.1}
  #allocation0 [shape = 'u32[]', space=smem, size = 0x4, offset = 0x4, fixed_abs, tag = 'smem constant byte address 0x4 - core index']
  #allocation1 [shape = 'u32[144,128]{1,0:T(1,128)}', space=vmem, size = 0x12000, scoped, tag = 'internal scratch']
  #allocation2 [shape = 'f32[1,16]{1,0:T(1,128)}', space=vmem, size = 0x200, scoped, tag = 'scratch operand']
  %s0 = inlined_call_operand.vmem [shape: f32[16,32], index: 0, kind: input, shape index: {}]
  %s1 = inlined_call_operand.hbm [shape: f32[16,32], index: 1, kind: input, shape index: {}]
  %s2 = inlined_call_operand.vmem [shape: f32[16,1], index: 2, kind: input, shape index: {}]
  %s3 = inlined_call_operand.hbm [shape: s32[1,16], index: 3, kind: output, shape index: {}]
  %s4 = sld [smem:[#allocation0]]
  $region34: #{tpu_custom_call.1} parent=0
    _
  %s6 = ssub.s32 1, %s4
  %s7 = scalar_select 0, %s6, %s4
  $region1: #{tpu_custom_call.1} parent=0
    #allocation3 [shape = 'u8[8192]{0}', space=vmem, size = 0x2000, scoped, tag = 'input window, operand 1, single buffered']
    #allocation4 [shape = 's32[1]{0}', space=sflag, size = 0x4, scoped, tag = 'scoped memory for tpu_custom_call.1']
    #allocation5 [shape = 's32[1]{0}', space=sflag, size = 0x4, scoped, tag = 'scoped memory for tpu_custom_call.1']
    #allocation6 [shape = 'u8[512]{0}', space=vmem, size = 0x400, scoped, tag = 'output window, operand 0, single buffered']
    %8 = vsyncpa [#allocation4], 0
    %9 = vsyncpa [#allocation5], 0
    // Predicated region
    $region2: #{tpu_custom_call.1} parent=1 // pred_check
      _
    $region3: #{tpu_custom_call.1} parent=1 // pred_check_branch
      %11 = sbr.rel (0) target = $region5
    $region4: #{tpu_custom_call.1} parent=1 // pred_region
      _
    $region5: #{tpu_custom_call.1} parent=1 // pred_fallthru
      _
    // Predicated region
    $region6: #{tpu_custom_call.1} parent=1 // pred_check
      _
    $region7: #{tpu_custom_call.1} parent=1 // pred_check_branch
      %13 = sbr.rel (0) target = $region9
    $region8: #{tpu_custom_call.1} parent=1 // pred_region
      %s15 = ssub.s32 256, 256
      %16 = vsyncadd [#allocation4], %s15
      %s17 = sshll.u32 [#allocation3], 4
      %s18 = int_to_ptr.vmem [resolvable:$true] %s17
      %23 = dma.hbm_to_vmem [thread:$0]  %s1, 256, %s18, [#allocation4], 128, 128, 8
    $region9: #{tpu_custom_call.1} parent=1 // pred_fallthru
      _
    // Predicated region
    $region10: #{tpu_custom_call.1} parent=1 // pred_check
      _
    $region11: #{tpu_custom_call.1} parent=1 // pred_check_branch
      %25 = sbr.rel (0) target = $region13
    $region12: #{tpu_custom_call.1} parent=1 // pred_region
      _
    $region13: #{tpu_custom_call.1} parent=1 // pred_fallthru
      _
    // Predicated region
    $region14: #{tpu_custom_call.1} parent=1 // pred_check
      _
    $region15: #{tpu_custom_call.1} parent=1 // pred_check_branch
      %27 = sbr.rel (0) target = $region17
    $region16: #{tpu_custom_call.1} parent=1 // pred_region
      %28 = dma.done [#allocation4], 256
    $region17: #{tpu_custom_call.1} parent=1 // pred_fallthru
      _
    %v29 = vld [vmem:[%s0] sm:$0xff]
    %v30 = vld [vmem:[%s0 + $0x8] sm:$0xff]
    %v31 = vmul.f32 %v29, -2.0
    %v32 = vmul.f32 %v30, -2.0
    %v33 = vld [vmem:[%s2] sm:$0xff]
    %v34 = vld [vmem:[%s2 + $0x8] sm:$0xff]
    %v35 = vld [vmem:[#allocation3] sm:$0xff]
    %v36 = vld [vmem:[#allocation3 + $0x8] sm:$0xff]
    %vm37 = vcmask 261120
    %v39 = vsel %vm37, %v35, 0
    %v42 = vsel %vm37, %v36, 0
    %v45 = vsel %vm37, %v31, 0
    %v48 = vsel %vm37, %v32, 0
    %50 = vmatprep.subr.mxu0 0.0
    %51 = vmatpush1.xpose.msra.mxu0 %v45
    %52 = vmatprep.subr.mxu0 0.0
    %53 = vmatpush1.xpose.msra.mxu0 %v48
    %54 = vmatprep.subr.mxu0 0.0
    %55 = vmatpush1.xpose.msra.mxu0 0.0
    %56 = vmatprep.subr.mxu0 0.0
    %57 = vmatpush1.xpose.msra.mxu0 0.0
    %58 = vmatprep.subr.mxu0 0.0
    %59 = vmatpush1.xpose.msra.mxu0 0.0
    %60 = vmatprep.subr.mxu0 0.0
    %61 = vmatpush1.xpose.msra.mxu0 0.0
    %62 = vmatprep.subr.mxu0 0.0
    %63 = vmatpush1.xpose.msra.mxu0 0.0
    %64 = vmatprep.subr.mxu0 0.0
    %65 = vmatpush1.xpose.msra.mxu0 0.0
    %66 = vmatprep.subr.mxu0 0.0
    %67 = vmatpush1.xpose.msra.mxu0 0.0
    %68 = vmatprep.subr.mxu0 0.0
    %69 = vmatpush1.xpose.msra.mxu0 0.0
    %70 = vmatprep.subr.mxu0 0.0
    %71 = vmatpush1.xpose.msra.mxu0 0.0
    %72 = vmatprep.subr.mxu0 0.0
    %73 = vmatpush1.xpose.msra.mxu0 0.0
    %74 = vmatprep.subr.mxu0 0.0
    %75 = vmatpush1.xpose.msra.mxu0 0.0
    %76 = vmatprep.subr.mxu0 0.0
    %77 = vmatpush1.xpose.msra.mxu0 0.0
    %78 = vmatprep.subr.mxu0 0.0
    %79 = vmatpush1.xpose.msra.mxu0 0.0
    %80 = vmatprep.subr.mxu0 0.0
    %81 = vmatpush1.xpose.msra.mxu0 0.0
    %82 = vmatprep.subr.mxu0 0.0
    %83 = vmatpush1.xpose.msra.mxu0 0.0
    %84 = vmatprep.subr.mxu0 0.0
    %85 = vmatpush1.xpose.msra.mxu0 0.0
    %86 = vmatprep.subr.mxu0 0.0
    %87 = vmatpush1.xpose.msra.mxu0 0.0
    %88 = vmatprep.subr.mxu0 0.0
    %89 = vmatpush1.xpose.msra.mxu0 0.0
    %90 = vmatprep.subr.mxu0 0.0
    %91 = vmatpush1.xpose.msra.mxu0 0.0
    %92 = vmatprep.subr.mxu0 0.0
    %93 = vmatpush1.xpose.msra.mxu0 0.0
    %94 = vmatprep.subr.mxu0 0.0
    %95 = vmatpush1.xpose.msra.mxu0 0.0
    %96 = vmatprep.subr.mxu0 0.0
    %97 = vmatpush1.xpose.msra.mxu0 0.0
    %98 = vmatprep.subr.mxu0 0.0
    %99 = vmatpush1.xpose.msra.mxu0 0.0
    %100 = vmatprep.subr.mxu0 0.0
    %101 = vmatpush1.xpose.msra.mxu0 0.0
    %102 = vmatprep.subr.mxu0 0.0
    %103 = vmatpush1.xpose.msra.mxu0 0.0
    %104 = vmatprep.subr.mxu0 0.0
    %105 = vmatpush1.xpose.msra.mxu0 0.0
    %106 = vmatprep.subr.mxu0 0.0
    %107 = vmatpush1.xpose.msra.mxu0 0.0
    %108 = vmatprep.subr.mxu0 0.0
    %109 = vmatpush1.xpose.msra.mxu0 0.0
    %110 = vmatprep.subr.mxu0 0.0
    %111 = vmatpush1.xpose.msra.mxu0 0.0
    %112 = vmatprep.subr.mxu0 0.0
    %113 = vmatpush1.xpose.msra.mxu0 0.0
    %114 = vmatprep.mubr.f32.mxu0 0.0
    %115 = vmatmul.mubr.f32.gmra.mrb[0].mxu0 %v39
    %v116 = vpop.f32.mrb[0].mxu0
    %v117 = vadd.f32 0.0, %v116
    %v118 = vpop.f32.mrb[0].mxu0
    %119 = vmatprep.mubr.f32.mxu0 0.0
    %120 = vmatmul.mubr.f32.gmra.mrb[0].mxu0 %v42
    %v121 = vpop.f32.mrb[0].mxu0
    %v122 = vadd.f32 0.0, %v121
    %v123 = vpop.f32.mrb[0].mxu0
    %124 = vdwg.mxu0
    %126 = vset.pattern.permute.xlu0 0
    %127 = vperm.xlu0 %126, %v33
    %v128 = vpop.permute.xlu0 %127
    %131 = vset.pattern.permute.xlu0 0
    %132 = vperm.xlu0 %131, %v34
    %v133 = vpop.permute.xlu0 %132
    %v135 = vadd.f32 %v128, %v117
    %v136 = vadd.f32 %v133, %v122
    %vm137 = vcmask 130048
    %v138 = vsel %vm137, %v135, inf
    %v139 = vsel %vm137, %v136, inf
    %v140 = vmin.f32 %v138, %v139
    %v141 = vrot.slane %v140, 4
    %v142 = vmin.f32 %v140, %v141
    %v143 = vrot.slane %v142, 2
    %v144 = vmin.f32 %v142, %v143
    %v145 = vrot.slane %v144, 1
    %v146 = vmin.f32 %v144, %v145
    %v147 = vlaneseq
    %v148 = vshrl.u32 %v147, 7
    %v149 = vadd.s32 %v148, 8
    %vm150 = vcmp.eq.f32.partialorder %v135, %v146
    %vm151 = vcmp.eq.f32.partialorder %v136, %v146
    %v152 = vsel %vm150, %v148, 16
    %v153 = vsel %vm151, %v149, 16
    %v154 = vsel %vm137, %v152, 2147483647
    %v155 = vsel %vm137, %v153, 2147483647
    %vm156 = vcmp.lt.s32.totalorder %v154, %v155
    %v157 = vsel %vm156, %v154, %v155
    %v158 = vrot.slane %v157, 4
    %vm159 = vcmp.lt.s32.totalorder %v157, %v158
    %v160 = vsel %vm159, %v157, %v158
    %v161 = vrot.slane %v160, 2
    %vm162 = vcmp.lt.s32.totalorder %v160, %v161
    %v163 = vsel %vm162, %v160, %v161
    %v164 = vrot.slane %v163, 1
    %vm165 = vcmp.lt.s32.totalorder %v163, %v164
    %v166 = vsel %vm165, %v163, %v164
    %s167 = smul.u32 0, 16
    %v168 = vstv %s167
    %v169 = vadd.s32 %v166, %v168
    %p170 = scmp.eq.s32.totalorder 0, 0
    // Predicated region
    $region18: #{tpu_custom_call.1} parent=1 // pred_check
      %p171 = pneg %p170
    $region19: #{tpu_custom_call.1} parent=1 // pred_check_branch
      %173 = sbr.rel (%p171) target = $region21
    $region20: #{tpu_custom_call.1} parent=1 // pred_region
      %vm174 = vcmask 122880
      %175 = vst.msk [vmem:[#allocation2] sm:$0x1] %vm174, %v146
      %176 = vst.msk [vmem:[#allocation6] sm:$0x1] %vm174, %v169
    $region21: #{tpu_custom_call.1} parent=1 // pred_fallthru
      _
    %p177 = scmp.gt.s32.totalorder 0, 0
    // Predicated region
    $region22: #{tpu_custom_call.1} parent=1 // pred_check
      %p178 = pneg %p177
    $region23: #{tpu_custom_call.1} parent=1 // pred_check_branch
      %180 = sbr.rel (%p178) target = $region25
    $region24: #{tpu_custom_call.1} parent=1 // pred_region
      %v181 = vld [vmem:[#allocation2] sm:$0x1]
      %vm182 = vcmp.lt.f32.partialorder %v146, %v181
      %v183 = vld [vmem:[#allocation6] sm:$0x1]
      %v184 = vsel %vm182, %v169, %v183
      %vm185 = vcmask 122880
      %186 = vst.msk [vmem:[#allocation6] sm:$0x1] %vm185, %v184
      %v187 = vld [vmem:[#allocation2] sm:$0x1]
      %v188 = vmin.f32 %v146, %v187
      %189 = vst.msk [vmem:[#allocation2] sm:$0x1] %vm185, %v188
    $region25: #{tpu_custom_call.1} parent=1 // pred_fallthru
      _
    // Predicated region
    $region26: #{tpu_custom_call.1} parent=1 // pred_check
      _
    $region27: #{tpu_custom_call.1} parent=1 // pred_check_branch
      %191 = sbr.rel (0) target = $region29
    $region28: #{tpu_custom_call.1} parent=1 // pred_region
      %s193 = ssub.s32 16, 16
      %194 = vsyncadd [#allocation5], %s193
      %s196 = sshll.u32 [#allocation6], 4
      %s197 = int_to_ptr.vmem [resolvable:$true] %s196
      %199 = dma.vmem_to_hbm [thread:$0]  %s197, 16, %s3, [#allocation5]
    $region29: #{tpu_custom_call.1} parent=1 // pred_fallthru
      _
    // Predicated region
    $region30: #{tpu_custom_call.1} parent=1 // pred_check
      _
    $region31: #{tpu_custom_call.1} parent=1 // pred_check_branch
      %201 = sbr.rel (0) target = $region33
    $region32: #{tpu_custom_call.1} parent=1 // pred_region
      %202 = dma.done [#allocation5], 16
    $region33: #{tpu_custom_call.1} parent=1 // pred_fallthru
      _
    %203 = vsyncpa [#allocation4], 1
    %204 = vsyncpa [#allocation5], 1

</llo_original>
